<compile_context>
chip_gen: v5e
topology: v5e:2x2
jax: 0.10.0
libtpu: 0.0.40
codegen_flags: <defaults>
</compile_context>

<pallas_src>
import functools

import jax
import jax.numpy as jnp
from jax.experimental import pallas as pl
from jax.experimental.pallas import tpu as pltpu


def _combined_loss_kernel(x_ref, lbl_ref, ce_ref, inter_ref, card_ref,
                          ce_acc, inter_acc, card_acc, *,
                          c, tile_hw, hw, n_h_ps, masked):
    j = pl.program_id(2)

    # Reset the per-(sample, split) accumulators at the first spatial tile.
    @pl.when(j == 0)
    def _():
        ce_acc[...] = jnp.zeros_like(ce_acc)
        inter_acc[...] = jnp.zeros_like(inter_acc)
        card_acc[...] = jnp.zeros_like(card_acc)

    x = x_ref[...].astype(jnp.float32)          # (C, T) logits (native dtype in HBM)
    cls = lbl_ref[...].astype(jnp.int32)        # (1, T) class indices (int8 in HBM)

    if masked:
        # Only the class-index row is masked (cheap, 1 row); p / ce_lane get a
        # single NaN/Inf-safe select each below.  No sanitize of x needed.
        s_idx = pl.program_id(1)
        lane = jax.lax.broadcasted_iota(jnp.int32, (1, tile_hw), 1)
        start = (s_idx * n_h_ps + j) * tile_hw
        valid = (start + lane) < hw             # (1, T) bool
        cls = jnp.where(valid, cls, -1)         # -1 never matches a class

    # Numerically-stable channel softmax / log-softmax.
    m = jnp.max(x, axis=0, keepdims=True)       # (1, T)
    xm = x - m                                  # (C, T)
    e = jnp.exp(xm)                             # EUP
    s = jnp.sum(e, axis=0, keepdims=True)       # (1, T)
    # EUP reciprocal + one Newton step -> ~f32 accuracy, no C*T divides.
    inv_s = pl.reciprocal(s, approx=True)
    inv_s = inv_s * (2.0 - s * inv_s)
    p = e * inv_s                               # (C, T) softmax probabilities
    log_s = jnp.log(s)                          # (1, T)

    # Rebuild the one-hot target mask from class indices; (C,1) iota broadcasts
    # inside the compare instead of materializing a full (C,T) iota per step.
    ch = jax.lax.broadcasted_iota(jnp.int32, (c, 1), 0)
    t_f = (ch == cls).astype(jnp.float32)       # (C, T); 0 on padded lanes

    # CE per pixel: -log_softmax[cls] = log(s) - (x - m)[cls].
    x_at_cls = jnp.sum(t_f * xm, axis=0, keepdims=True)   # (1, T)
    ce_lane = log_s - x_at_cls
    if masked:
        p = jnp.where(valid, p, 0.0)            # kill garbage/NaN on padded lanes
        ce_lane = jnp.where(valid, ce_lane, 0.0)

    # Per-step lane reductions (XLU) into tiny accumulators — no full-tile
    # accumulator load/store traffic.
    ce_acc[...] += jnp.sum(ce_lane, axis=1, keepdims=True)            # (1, 1)
    inter_acc[...] += jnp.sum(p * t_f, axis=1, keepdims=True)         # (C, 1)
    card_acc[...] += (jnp.sum(p, axis=1, keepdims=True)
                      + jnp.sum(t_f, axis=1, keepdims=True))          # (C, 1)

    # Emit the per-(sample, split) partials once, as lane-dense (*, 128) blocks.
    @pl.when(j == n_h_ps - 1)
    def _():
        ce_ref[...] = jnp.broadcast_to(ce_acc[...], ce_ref.shape)
        inter_ref[...] = jnp.broadcast_to(inter_acc[...], inter_ref.shape)
        card_ref[...] = jnp.broadcast_to(card_acc[...], card_ref.shape)


def _pick_tile_hw(c, hw, logit_itemsize, budget_bytes=None):
    """Spatial tile (multiple of 128) sized against a generation-aware VMEM
    budget, accounting for compiler-materialized full-block f32 temporaries and
    sublane padding of small C; hard-capped at 8192 lanes (>=512-lane tiles
    already sit at ~85% of HBM roofline)."""
    if budget_bytes is None:
        try:
            cap = pltpu.get_tpu_info().vmem_capacity_bytes
        except Exception:
            cap = 64 * 1024 * 1024              # conservative (v7x per-TC)
        budget_bytes = cap // 8
    c_pad = ((c + 7) // 8) * 8                  # C=4 pads to 8 sublanes in VMEM
    # Per HW column: double-buffered logits + int8 labels + ~6 live full-block
    # f32 temporaries (x_f32/e/p/mask/products) around the channel reductions.
    per_col = 2 * c_pad * logit_itemsize + 2 * 1 + 6 * c_pad * 4
    tile = budget_bytes // per_col
    tile = max(128, (tile // 128) * 128)
    tile = min(tile, 8192)
    if tile >= hw:
        return int(hw)
    return int(tile)


def combined_ce_dice_loss(inputs, targets, *, dice_weights=None, dice_weight=0.9,
                          ce_weight=0.1, smooth=1e-5, tile_hw=None, hw_splits=None):
    """inputs: (N, C, H, W) logits (any float dtype, streamed in native dtype).
    targets: (N, H, W) integer class-index map, or a dense (N, C, H, W) one-hot.
    dice_weights: optional per-class weights (WeightedDiceLoss.weights)."""
    n, c, h, w = inputs.shape
    hw = h * w

    if targets.ndim == 4:
        # TODO(synk): soft (non-one-hot) probability targets would need a dense
        # target path; this kernel streams class indices (1/C of the traffic).
        labels = jnp.argmax(targets, axis=1)
    else:
        labels = targets
    lbl_dtype = jnp.int8 if c <= 128 else jnp.int32   # 1 B/pixel label traffic
    lbl = labels.reshape(n, 1, hw).astype(lbl_dtype)

    x = inputs.reshape(n, c, hw)                 # native dtype (bf16 friendly)

    if tile_hw is None:
        tile_hw = _pick_tile_hw(c, hw, x.dtype.itemsize)
    tile_hw = min(tile_hw, hw) if tile_hw >= hw else tile_hw
    n_h_total = pl.cdiv(hw, tile_hw)

    # Optional HW split across a second parallel grid axis: keeps both v7x
    # TensorCores busy when N is tiny.  Only used when it divides the tile
    # count evenly (no fully out-of-bounds blocks).
    if hw_splits is None:
        hw_splits = 2 if (n < 2 and n_h_total >= 2 and n_h_total % 2 == 0) else 1
    hw_splits = max(1, min(hw_splits, n_h_total))
    if n_h_total % hw_splits != 0:
        hw_splits = 1
    n_h_ps = n_h_total // hw_splits

    masked = (hw % tile_hw) != 0                 # no-mask variant when divisible

    kernel = functools.partial(
        _combined_loss_kernel,
        c=c, tile_hw=tile_hw, hw=hw, n_h_ps=n_h_ps, masked=masked)

    # NOTE: on v5e/v6e (128 MiB VMEM) the logits spec could additionally use
    # pipeline_mode=pl.Buffered(3) to deepen the pipeline; kept at the default
    # double-buffering here for portability.
    ce_p, inter_p, card_p = pl.pallas_call(
        kernel,
        out_shape=(jax.ShapeDtypeStruct((n, hw_splits, 1, 128), jnp.float32),
                   jax.ShapeDtypeStruct((n, hw_splits, c, 128), jnp.float32),
                   jax.ShapeDtypeStruct((n, hw_splits, c, 128), jnp.float32)),
        grid_spec=pltpu.PrefetchScalarGridSpec(
            num_scalar_prefetch=0,
            grid=(n, hw_splits, n_h_ps),
            in_specs=[
                pl.BlockSpec((None, c, tile_hw),
                             lambda i, s, j: (i, 0, s * n_h_ps + j)),
                pl.BlockSpec((None, 1, tile_hw),
                             lambda i, s, j: (i, 0, s * n_h_ps + j)),
            ],
            out_specs=[
                pl.BlockSpec((None, None, 1, 128), lambda i, s, j: (i, s, 0, 0)),
                pl.BlockSpec((None, None, c, 128), lambda i, s, j: (i, s, 0, 0)),
                pl.BlockSpec((None, None, c, 128), lambda i, s, j: (i, s, 0, 0)),
            ],
            scratch_shapes=[
                pltpu.VMEM((1, 1), jnp.float32),   # CE partial sum
                pltpu.VMEM((c, 1), jnp.float32),   # per-class intersection
                pltpu.VMEM((c, 1), jnp.float32),   # per-class cardinality
            ],
        ),
        compiler_params=pltpu.CompilerParams(
            dimension_semantics=("parallel", "parallel", "arbitrary"),
            vmem_limit_bytes=32 * 1024 * 1024),
    )(x, lbl)

    # Tiny final combine in XLA (also where per-class dice weights are applied).
    ce_loss = jnp.sum(ce_p[..., 0, 0]) / (n * hw)
    inter = jnp.sum(inter_p[..., 0], axis=1)     # (N, C)
    card = jnp.sum(card_p[..., 0], axis=1)       # (N, C)
    dice = 1.0 - (2.0 * inter + smooth) / (card + smooth)
    if dice_weights is not None:
        dice = dice * jnp.asarray(dice_weights, jnp.float32)
    # PyTorch module: dice_loss.sum() / N  (sum over classes, mean over batch).
    dice_loss = jnp.sum(dice) / n
    return ce_weight * ce_loss + dice_weight * dice_loss


def _reference_loss(inputs, labels, *, dice_weights=None, dice_weight=0.9,
                    ce_weight=0.1, smooth=1e-5):
    # Pure-JAX reference mirroring the PyTorch module (one-hot targets).
    c = inputs.shape[1]
    targets = jax.nn.one_hot(labels, c, axis=1, dtype=jnp.float32)
    x = inputs.astype(jnp.float32)
    log_sm = jax.nn.log_softmax(x, axis=1)
    ce = jnp.mean(-jnp.sum(targets * log_sm, axis=1))
    p = jax.nn.softmax(x, axis=1)
    inter = jnp.sum(p * targets, axis=(2, 3))           # (N, C)
    card = jnp.sum(p + targets, axis=(2, 3))             # (N, C)
    dice = 1.0 - (2.0 * inter + smooth) / (card + smooth)
    if dice_weights is not None:
        dice = dice * jnp.asarray(dice_weights, jnp.float32)
    dice = jnp.sum(dice) / inputs.shape[0]
    return ce_weight * ce + dice_weight * dice


if __name__ == "__main__":
    key = jax.random.PRNGKey(0)
    k_logit, k_cls, k2, k3 = jax.random.split(key, 4)

    N, C, H, W = 2, 4, 16, 16
    inputs = jax.random.normal(k_logit, (N, C, H, W), dtype=jnp.float32)
    labels = jax.random.randint(k_cls, (N, H, W), 0, C, dtype=jnp.int32)

    # f32 logits, class-index targets (fast path).
    loss = jax.block_until_ready(combined_ce_dice_loss(inputs, labels))
    ref = _reference_loss(inputs, labels)
    assert jnp.allclose(loss, ref, rtol=1e-4, atol=1e-4), (loss, ref)

    # Dense one-hot targets (module-faithful interface) must give the same value.
    onehot = jax.nn.one_hot(labels, C, axis=1, dtype=jnp.float32)
    loss_dense = jax.block_until_ready(combined_ce_dice_loss(inputs, onehot))
    assert jnp.allclose(loss_dense, ref, rtol=1e-4, atol=1e-4), (loss_dense, ref)

    # Per-class dice weights (WeightedDiceLoss.weights) now plumbed through.
    wts = jnp.array([0.5, 1.0, 1.5, 2.0], jnp.float32)
    loss_w = jax.block_until_ready(
        combined_ce_dice_loss(inputs, labels, dice_weights=wts))
    ref_w = _reference_loss(inputs, labels, dice_weights=wts)
    assert jnp.allclose(loss_w, ref_w, rtol=1e-4, atol=1e-4), (loss_w, ref_w)

    # Partial tail tile (hw % tile_hw != 0) exercises the masked variant.
    H2 = W2 = 20
    inputs2 = jax.random.normal(k2, (N, C, H2, W2), dtype=jnp.float32)
    labels2 = jax.random.randint(k3, (N, H2, W2), 0, C, dtype=jnp.int32)
    loss2 = jax.block_until_ready(
        combined_ce_dice_loss(inputs2, labels2, tile_hw=256))
    ref2 = _reference_loss(inputs2, labels2)
    assert jnp.allclose(loss2, ref2, rtol=1e-4, atol=1e-4), (loss2, ref2)

    # Explicit hw-split (small-batch megacore path) on an evenly tiled input.
    inputs3 = jax.random.normal(k2, (1, C, 16, 32), dtype=jnp.float32)
    labels3 = jax.random.randint(k3, (1, 16, 32), 0, C, dtype=jnp.int32)
    loss3 = jax.block_until_ready(
        combined_ce_dice_loss(inputs3, labels3, tile_hw=256, hw_splits=2))
    ref3 = _reference_loss(inputs3, labels3)
    assert jnp.allclose(loss3, ref3, rtol=1e-4, atol=1e-4), (loss3, ref3)

    # Native bf16 logits path (half the logit HBM traffic); loose tolerance.
    loss_bf16 = jax.block_until_ready(
        combined_ce_dice_loss(inputs.astype(jnp.bfloat16), labels))
    assert jnp.isfinite(loss_bf16)
    assert jnp.abs(loss_bf16 - ref) / jnp.abs(ref) < 5e-2, (loss_bf16, ref)

    print("KERNEL_OK")
</pallas_src>

<mosaic_0001>
module attributes {stable_mosaic.version = 11 : i64} {
  func.func @_combined_loss_kernel(%arg0: i32, %arg1: i32, %arg2: i32, %arg3: memref<1x4x256xf32, #tpu.memory_space<vmem>>, %arg4: memref<1x1x256xi8, #tpu.memory_space<vmem>>, %arg5: memref<1x1x1x128xf32, #tpu.memory_space<vmem>>, %arg6: memref<1x1x4x128xf32, #tpu.memory_space<vmem>>, %arg7: memref<1x1x4x128xf32, #tpu.memory_space<vmem>>, %arg8: memref<1x1xf32, #tpu.memory_space<vmem>>, %arg9: memref<4x1xf32, #tpu.memory_space<vmem>>, %arg10: memref<4x1xf32, #tpu.memory_space<vmem>>) attributes {dimension_semantics = [#tpu.dimension_semantics<parallel>, #tpu.dimension_semantics<parallel>, #tpu.dimension_semantics<arbitrary>], iteration_bounds = array<i64: 2, 1, 1>, scalar_prefetch = 0 : i64, scratch_operands = 3 : i64, tpu.core_type = #tpu.core_type<tc>, window_params = [{transform_indices = @transform_0, window_bounds = array<i64: 1, 4, 256>}, {transform_indices = @transform_1, window_bounds = array<i64: 1, 1, 256>}, {transform_indices = @transform_2, window_bounds = array<i64: 1, 1, 1, 128>}, {transform_indices = @transform_3, window_bounds = array<i64: 1, 1, 4, 128>}, {transform_indices = @transform_4, window_bounds = array<i64: 1, 1, 4, 128>}]} {
    %c0_i32 = arith.constant 0 : i32
    %0 = arith.cmpi eq, %arg2, %c0_i32 : i32
    %1 = arith.extui %0 : i1 to i32
    %c0_i32_0 = arith.constant 0 : i32
    %2 = arith.cmpi ne, %1, %c0_i32_0 : i32
    scf.if %2 {
      %cst_27 = arith.constant 0.000000e+00 : f32
      %55 = vector.broadcast %cst_27 : f32 to vector<1x1xf32>
      %c0_28 = arith.constant 0 : index
      %c0_29 = arith.constant 0 : index
      %56 = vector.load %arg8[%c0_28, %c0_29] : memref<1x1xf32, #tpu.memory_space<vmem>>, vector<1x1xf32>
      tpu.vector_store %arg8[%c0_28, %c0_29], %55 {strides = array<i32>} : memref<1x1xf32, #tpu.memory_space<vmem>>, vector<1x1xf32>,
      %cst_30 = arith.constant 0.000000e+00 : f32
      %57 = vector.broadcast %cst_30 : f32 to vector<4x1xf32>
      %c0_31 = arith.constant 0 : index
      %c0_32 = arith.constant 0 : index
      %58 = vector.load %arg9[%c0_31, %c0_32] : memref<4x1xf32, #tpu.memory_space<vmem>>, vector<4x1xf32>
      tpu.vector_store %arg9[%c0_31, %c0_32], %57 {strides = array<i32>} : memref<4x1xf32, #tpu.memory_space<vmem>>, vector<4x1xf32>,
      %cst_33 = arith.constant 0.000000e+00 : f32
      %59 = vector.broadcast %cst_33 : f32 to vector<4x1xf32>
      %c0_34 = arith.constant 0 : index
      %c0_35 = arith.constant 0 : index
      %60 = vector.load %arg10[%c0_34, %c0_35] : memref<4x1xf32, #tpu.memory_space<vmem>>, vector<4x1xf32>
      tpu.vector_store %arg10[%c0_34, %c0_35], %59 {strides = array<i32>} : memref<4x1xf32, #tpu.memory_space<vmem>>, vector<4x1xf32>,
    } else {
    }
    %c0 = arith.constant 0 : index
    %c0_1 = arith.constant 0 : index
    %c0_2 = arith.constant 0 : index
    %3 = vector.load %arg3[%c0, %c0_1, %c0_2] : memref<1x4x256xf32, #tpu.memory_space<vmem>>, vector<1x4x256xf32>
    %4 = vector.shape_cast %3 : vector<1x4x256xf32> to vector<4x256xf32>
    %c0_3 = arith.constant 0 : index
    %c0_4 = arith.constant 0 : index
    %c0_5 = arith.constant 0 : index
    %5 = vector.load %arg4[%c0_3, %c0_4, %c0_5] : memref<1x1x256xi8, #tpu.memory_space<vmem>>, vector<1x1x256xi8>
    %6 = vector.shape_cast %5 : vector<1x1x256xi8> to vector<1x256xi8>
    %7 = arith.extsi %6 : vector<1x256xi8> to vector<1x256xi32>
    %cst = arith.constant dense<0xFF800000> : vector<256xf32>
    %8 = vector.multi_reduction <maximumf>, %4, %cst [0] : vector<4x256xf32> to vector<256xf32>
    %9 = vector.shape_cast %8 : vector<256xf32> to vector<1x256xf32>
    %10 = vector.broadcast %9 : vector<1x256xf32> to vector<4x256xf32>
    %11 = arith.subf %4, %10 : vector<4x256xf32>
    %12 = math.exp %11 : vector<4x256xf32>
    %cst_6 = arith.constant dense<0.000000e+00> : vector<256xf32>
    %13 = vector.multi_reduction <add>, %12, %cst_6 [0] : vector<4x256xf32> to vector<256xf32>
    %14 = vector.shape_cast %13 : vector<256xf32> to vector<1x256xf32>
    %15 = tpu.reciprocal %14 {approx = true} : vector<1x256xf32> -> vector<1x256xf32>
    %16 = arith.mulf %14, %15 : vector<1x256xf32>
    %cst_7 = arith.constant 2.000000e+00 : f32
    %17 = vector.broadcast %cst_7 : f32 to vector<1x256xf32>
    %18 = arith.subf %17, %16 : vector<1x256xf32>
    %19 = arith.mulf %15, %18 : vector<1x256xf32>
    %20 = vector.broadcast %19 : vector<1x256xf32> to vector<4x256xf32>
    %21 = arith.mulf %12, %20 : vector<4x256xf32>
    %22 = math.log %14 : vector<1x256xf32>
    %23 = tpu.iota {dimensions = array<i32: 0>} : vector<4x1xi32>
    %24 = vector.broadcast %23 : vector<4x1xi32> to vector<4x256xi32>
    %25 = vector.broadcast %7 : vector<1x256xi32> to vector<4x256xi32>
    %26 = arith.cmpi eq, %24, %25 : vector<4x256xi32>
    %27 = arith.extui %26 : vector<4x256xi1> to vector<4x256xi32>
    %28 = arith.sitofp %27 : vector<4x256xi32> to vector<4x256xf32>
    %29 = arith.mulf %28, %11 : vector<4x256xf32>
    %cst_8 = arith.constant dense<0.000000e+00> : vector<256xf32>
    %30 = vector.multi_reduction <add>, %29, %cst_8 [0] : vector<4x256xf32> to vector<256xf32>
    %31 = vector.shape_cast %30 : vector<256xf32> to vector<1x256xf32>
    %32 = arith.subf %22, %31 : vector<1x256xf32>
    %c0_9 = arith.constant 0 : index
    %c0_10 = arith.constant 0 : index
    %33 = vector.load %arg8[%c0_9, %c0_10] : memref<1x1xf32, #tpu.memory_space<vmem>>, vector<1x1xf32>
    %cst_11 = arith.constant dense<0.000000e+00> : vector<1xf32>
    %34 = vector.multi_reduction <add>, %32, %cst_11 [1] : vector<1x256xf32> to vector<1xf32>
    %35 = vector.shape_cast %34 : vector<1xf32> to vector<1x1xf32>
    %36 = arith.addf %33, %35 : vector<1x1xf32>
    %c0_12 = arith.constant 0 : index
    %c0_13 = arith.constant 0 : index
    %37 = vector.load %arg8[%c0_12, %c0_13] : memref<1x1xf32, #tpu.memory_space<vmem>>, vector<1x1xf32>
    tpu.vector_store %arg8[%c0_12, %c0_13], %36 {strides = array<i32>} : memref<1x1xf32, #tpu.memory_space<vmem>>, vector<1x1xf32>,
    %c0_14 = arith.constant 0 : index
    %c0_15 = arith.constant 0 : index
    %38 = vector.load %arg9[%c0_14, %c0_15] : memref<4x1xf32, #tpu.memory_space<vmem>>, vector<4x1xf32>
    %39 = arith.mulf %21, %28 : vector<4x256xf32>
    %cst_16 = arith.constant dense<0.000000e+00> : vector<4xf32>
    %40 = vector.multi_reduction <add>, %39, %cst_16 [1] : vector<4x256xf32> to vector<4xf32>
    %41 = vector.shape_cast %40 : vector<4xf32> to vector<4x1xf32>
    %42 = arith.addf %38, %41 : vector<4x1xf32>
    %c0_17 = arith.constant 0 : index
    %c0_18 = arith.constant 0 : index
    %43 = vector.load %arg9[%c0_17, %c0_18] : memref<4x1xf32, #tpu.memory_space<vmem>>, vector<4x1xf32>
    tpu.vector_store %arg9[%c0_17, %c0_18], %42 {strides = array<i32>} : memref<4x1xf32, #tpu.memory_space<vmem>>, vector<4x1xf32>,
    %c0_19 = arith.constant 0 : index
    %c0_20 = arith.constant 0 : index
    %44 = vector.load %arg10[%c0_19, %c0_20] : memref<4x1xf32, #tpu.memory_space<vmem>>, vector<4x1xf32>
    %cst_21 = arith.constant dense<0.000000e+00> : vector<4xf32>
    %45 = vector.multi_reduction <add>, %21, %cst_21 [1] : vector<4x256xf32> to vector<4xf32>
    %46 = vector.shape_cast %45 : vector<4xf32> to vector<4x1xf32>
    %cst_22 = arith.constant dense<0.000000e+00> : vector<4xf32>
    %47 = vector.multi_reduction <add>, %28, %cst_22 [1] : vector<4x256xf32> to vector<4xf32>
    %48 = vector.shape_cast %47 : vector<4xf32> to vector<4x1xf32>
    %49 = arith.addf %46, %48 : vector<4x1xf32>
    %50 = arith.addf %44, %49 : vector<4x1xf32>
    %c0_23 = arith.constant 0 : index
    %c0_24 = arith.constant 0 : index
    %51 = vector.load %arg10[%c0_23, %c0_24] : memref<4x1xf32, #tpu.memory_space<vmem>>, vector<4x1xf32>
    tpu.vector_store %arg10[%c0_23, %c0_24], %50 {strides = array<i32>} : memref<4x1xf32, #tpu.memory_space<vmem>>, vector<4x1xf32>,
    %c0_i32_25 = arith.constant 0 : i32
    %52 = arith.cmpi eq, %arg2, %c0_i32_25 : i32
    %53 = arith.extui %52 : i1 to i32
    %c0_i32_26 = arith.constant 0 : i32
    %54 = arith.cmpi ne, %53, %c0_i32_26 : i32
    scf.if %54 {
      %c0_27 = arith.constant 0 : index
      %c0_28 = arith.constant 0 : index
      %55 = vector.load %arg8[%c0_27, %c0_28] : memref<1x1xf32, #tpu.memory_space<vmem>>, vector<1x1xf32>
      %56 = vector.shape_cast %55 : vector<1x1xf32> to vector<1x1xf32>
      %57 = vector.broadcast %56 : vector<1x1xf32> to vector<1x128xf32>
      %c0_29 = arith.constant 0 : index
      %c0_30 = arith.constant 0 : index
      %c0_31 = arith.constant 0 : index
      %c0_32 = arith.constant 0 : index
      %58 = vector.load %arg5[%c0_29, %c0_30, %c0_31, %c0_32] : memref<1x1x1x128xf32, #tpu.memory_space<vmem>>, vector<1x1x1x128xf32>
      %59 = vector.shape_cast %58 : vector<1x1x1x128xf32> to vector<1x128xf32>
      %60 = vector.shape_cast %57 : vector<1x128xf32> to vector<1x1x1x128xf32>
      tpu.vector_store %arg5[%c0_29, %c0_30, %c0_31, %c0_32], %60 {strides = array<i32>} : memref<1x1x1x128xf32, #tpu.memory_space<vmem>>, vector<1x1x1x128xf32>,
      %c0_33 = arith.constant 0 : index
      %c0_34 = arith.constant 0 : index
      %61 = vector.load %arg9[%c0_33, %c0_34] : memref<4x1xf32, #tpu.memory_space<vmem>>, vector<4x1xf32>
      %62 = vector.shape_cast %61 : vector<4x1xf32> to vector<4x1xf32>
      %63 = vector.broadcast %62 : vector<4x1xf32> to vector<4x128xf32>
      %c0_35 = arith.constant 0 : index
      %c0_36 = arith.constant 0 : index
      %c0_37 = arith.constant 0 : index
      %c0_38 = arith.constant 0 : index
      %64 = vector.load %arg6[%c0_35, %c0_36, %c0_37, %c0_38] : memref<1x1x4x128xf32, #tpu.memory_space<vmem>>, vector<1x1x4x128xf32>
      %65 = vector.shape_cast %64 : vector<1x1x4x128xf32> to vector<4x128xf32>
      %66 = vector.shape_cast %63 : vector<4x128xf32> to vector<1x1x4x128xf32>
      tpu.vector_store %arg6[%c0_35, %c0_36, %c0_37, %c0_38], %66 {strides = array<i32>} : memref<1x1x4x128xf32, #tpu.memory_space<vmem>>, vector<1x1x4x128xf32>,
      %c0_39 = arith.constant 0 : index
      %c0_40 = arith.constant 0 : index
      %67 = vector.load %arg10[%c0_39, %c0_40] : memref<4x1xf32, #tpu.memory_space<vmem>>, vector<4x1xf32>
      %68 = vector.shape_cast %67 : vector<4x1xf32> to vector<4x1xf32>
      %69 = vector.broadcast %68 : vector<4x1xf32> to vector<4x128xf32>
      %c0_41 = arith.constant 0 : index
      %c0_42 = arith.constant 0 : index
      %c0_43 = arith.constant 0 : index
      %c0_44 = arith.constant 0 : index
      %70 = vector.load %arg7[%c0_41, %c0_42, %c0_43, %c0_44] : memref<1x1x4x128xf32, #tpu.memory_space<vmem>>, vector<1x1x4x128xf32>
      %71 = vector.shape_cast %70 : vector<1x1x4x128xf32> to vector<4x128xf32>
      %72 = vector.shape_cast %69 : vector<4x128xf32> to vector<1x1x4x128xf32>
      tpu.vector_store %arg7[%c0_41, %c0_42, %c0_43, %c0_44], %72 {strides = array<i32>} : memref<1x1x4x128xf32, #tpu.memory_space<vmem>>, vector<1x1x4x128xf32>,
    } else {
    }
    return
  }
  func.func @transform_0(%arg0: i32, %arg1: i32, %arg2: i32) -> (i32, i32, i32) {
    %c1_i32 = arith.constant 1 : i32
    %0 = arith.muli %arg1, %c1_i32 : i32
    %1 = arith.addi %0, %arg2 : i32
    %c0_i32 = arith.constant 0 : i32
    %c0_i32_0 = arith.constant 0 : i32
    return %arg0, %c0_i32, %1 : i32, i32, i32
  }
  func.func @transform_1(%arg0: i32, %arg1: i32, %arg2: i32) -> (i32, i32, i32) {
    %c1_i32 = arith.constant 1 : i32
    %0 = arith.muli %arg1, %c1_i32 : i32
    %1 = arith.addi %0, %arg2 : i32
    %c0_i32 = arith.constant 0 : i32
    %c0_i32_0 = arith.constant 0 : i32
    return %arg0, %c0_i32, %1 : i32, i32, i32
  }
  func.func @transform_2(%arg0: i32, %arg1: i32, %arg2: i32) -> (i32, i32, i32, i32) {
    %c0_i32 = arith.constant 0 : i32
    %c0_i32_0 = arith.constant 0 : i32
    %c0_i32_1 = arith.constant 0 : i32
    return %arg0, %arg1, %c0_i32, %c0_i32_0 : i32, i32, i32, i32
  }
  func.func @transform_3(%arg0: i32, %arg1: i32, %arg2: i32) -> (i32, i32, i32, i32) {
    %c0_i32 = arith.constant 0 : i32
    %c0_i32_0 = arith.constant 0 : i32
    %c0_i32_1 = arith.constant 0 : i32
    return %arg0, %arg1, %c0_i32, %c0_i32_0 : i32, i32, i32, i32
  }
  func.func @transform_4(%arg0: i32, %arg1: i32, %arg2: i32) -> (i32, i32, i32, i32) {
    %c0_i32 = arith.constant 0 : i32
    %c0_i32_0 = arith.constant 0 : i32
    %c0_i32_1 = arith.constant 0 : i32
    return %arg0, %arg1, %c0_i32, %c0_i32_0 : i32, i32, i32, i32
  }
}

</mosaic_0001>

<llo_original>
// kernel: tpu_custom_call.1
$region0: #{tpu_custom_call.1}
  #allocation0 [shape = 'u32[]', space=smem, size = 0x4, offset = 0x4, fixed_abs, tag = 'smem constant byte address 0x4 - core index']
  #allocation1 [shape = 'u32[72,128]{1,0:T(1,128)}', space=vmem, size = 0x9000, scoped, tag = 'internal scratch']
  #allocation2 [shape = 'f32[1,1]{1,0:T(1,128)}', space=vmem, size = 0x200, scoped, tag = 'scratch operand']
  #allocation3 [shape = 'f32[4,1]{1,0:T(4,128)}', space=vmem, size = 0x800, scoped, tag = 'scratch operand']
  #allocation4 [shape = 'f32[4,1]{1,0:T(4,128)}', space=vmem, size = 0x800, scoped, tag = 'scratch operand']
  %s0 = inlined_call_operand.hbm [shape: f32[2,4,256], index: 0, kind: input, shape index: {}]
  %s1 = inlined_call_operand.vmem [shape: s8[2,1,256], index: 1, kind: input, shape index: {}]
  %s2 = inlined_call_operand.hbm [shape: f32[2,1,1,128], index: 2, kind: output, shape index: {0}]
  %s3 = inlined_call_operand.hbm [shape: f32[2,1,4,128], index: 3, kind: output, shape index: {1}]
  %s4 = inlined_call_operand.hbm [shape: f32[2,1,4,128], index: 4, kind: output, shape index: {2}]
  %5 = xla_tuple %s2, %s3, %s4
  %s6 = sld [smem:[#allocation0]]
  $region69: #{tpu_custom_call.1} parent=0
    _
  %s8 = ssub.s32 1, %s6
  %s9 = scalar_select 0, %s8, %s6
  $region1: #{tpu_custom_call.1} parent=0
    #allocation5 [shape = 'u8[8192]{0}', space=vmem, size = 0x2000, scoped, tag = 'input window, operand 0']
    #allocation6 [shape = 's32[2]{0}', space=sflag, size = 0x8, scoped, tag = 'scoped memory for tpu_custom_call.1']
    #allocation7 [shape = 's32[2]{0}', space=sflag, size = 0x8, scoped, tag = 'scoped memory for tpu_custom_call.1']
    #allocation8 [shape = 'u8[1024]{0}', space=vmem, size = 0x400, scoped, tag = 'output window, operand 0']
    #allocation9 [shape = 'u8[4096]{0}', space=vmem, size = 0x1000, scoped, tag = 'output window, operand 1']
    #allocation10 [shape = 's32[2]{0}', space=sflag, size = 0x8, scoped, tag = 'scoped memory for tpu_custom_call.1']
    #allocation11 [shape = 'u8[4096]{0}', space=vmem, size = 0x1000, scoped, tag = 'output window, operand 2']
    %10 = vsyncpa [#allocation6], 0
    %s11 = scalar_lea.sflag [#allocation6], 1
    %12 = vsyncpa %s11, 0
    %13 = vsyncpa [#allocation7], 0
    %s14 = scalar_lea.sflag [#allocation7], 1
    %15 = vsyncpa %s14, 0
    %16 = vsyncpa [#allocation10], 0
    %s17 = scalar_lea.sflag [#allocation10], 1
    %18 = vsyncpa %s17, 0
    loop: start=0, step=1, limit=4
    $region2: #{tpu_custom_call.1} parent=1 // loop_pre_header
      _
    $region3: #{tpu_custom_call.1} parent=1 // loop_header
      %s20 = sphi 0, %s24
      %p21 = scmp.ge.s32.totalorder %s20, 4
      %s27 = sphi 0, %s46
      %s28 = sphi 0, %s42
      %s29 = sphi 0, %s38
      %s30 = sphi 0, %s27
      %s31 = sphi 0, %s28
      %s32 = sphi 0, %s29
      %s33 = sphi 0, %s30
      %s34 = sphi 0, %s31
      %s35 = sphi 0, %s32
      %s53 = sphi 0, %s55
      %s56 = sphi 0, %s53
      %s57 = sphi 0, %s56
      %s73 = sphi 0, %s57
      %s83 = sphi 0, %s85
      %s86 = sphi 0, %s83
      %s87 = sphi 0, %s86
      %s103 = sphi 0, %s87
      %s111 = sphi 0, %s113
      %s114 = sphi 0, %s111
      %s115 = sphi 0, %s114
      %s131 = sphi 0, %s115
      %s139 = sphi 0, %s141
      %s142 = sphi 0, %s139
      %s143 = sphi 0, %s142
      %s159 = sphi 0, %s143
      %s167 = sphi 0, %s169
      %s170 = sphi 0, %s167
      %s171 = sphi 0, %s170
      %s187 = sphi 0, %s171
    $region4: #{tpu_custom_call.1} parent=1 // loop_header_branch
      %23 = sbr.rel (%p21) target = $region8
    $region5: #{tpu_custom_call.1} parent=1 // loop_body
      %s25 = ssub.s32 %s20, 1
      %s26 = ssub.s32 %s20, 2
      %s36 = sadd.s32 1, %s29
      %p37 = scmp.ge.s32.totalorder %s36, 1
      %s38 = scalar_select %p37, 0, %s36
      %s39 = sadd.s32 1, %s28
      %s40 = scalar_select %p37, %s39, %s28
      %p41 = scmp.ge.s32.totalorder %s40, 1
      %s42 = scalar_select %p41, 0, %s40
      %s43 = sadd.s32 1, %s27
      %s44 = scalar_select %p41, %s43, %s27
      %p45 = scmp.ge.s32.totalorder %s44, 2
      %s46 = scalar_select %p45, 0, %s44
      %s47 = sadd.s32 %s28, %s29
      %s48 = sadd.s32 %s42, %s38
      %s49 = ssub.s32 %s27, %s46
      %s50 = ssub.s32 %s47, %s48
      %s51 = sor.u32 %s49, %s50
      %p52 = scmp.eq.s32.totalorder %s51, 0
      %s54 = sadd.s32 %s53, 1
      %s55 = scalar_select %p52, %s53, %s54
      %p58 = pneg %p52
      %p59 = scmp.eq.s32.totalorder %s20, 1
      %p60 = por %p58, %p59
      %p61 = scmp.ne.s32.totalorder %s53, %s56
      %p62 = scmp.eq.s32.totalorder %s20, 0
      %p63 = por %p61, %p62
      %p64 = scmp.ne.s32.totalorder %s53, %s56
      %p65 = scmp.eq.s32.totalorder %s25, 1
      %p66 = por %p64, %p65
      %p67 = scmp.ne.s32.totalorder %s56, %s57
      %p68 = scmp.eq.s32.totalorder %s25, 0
      %p69 = por %p67, %p68
      %p70 = scmp.ne.s32.totalorder %s56, %s57
      %p71 = scmp.eq.s32.totalorder %s26, 1
      %p72 = por %p70, %p71
      %p74 = scmp.ne.s32.totalorder %s57, %s73
      %p75 = scmp.eq.s32.totalorder %s26, 0
      %p76 = por %p74, %p75
      %s77 = sadd.s32 %s28, %s29
      %s78 = sadd.s32 %s42, %s38
      %s79 = ssub.s32 %s27, %s46
      %s80 = ssub.s32 %s77, %s78
      %s81 = sor.u32 %s79, %s80
      %p82 = scmp.eq.s32.totalorder %s81, 0
      %s84 = sadd.s32 %s83, 1
      %s85 = scalar_select %p82, %s83, %s84
      %p88 = pneg %p82
      %p89 = scmp.eq.s32.totalorder %s20, 1
      %p90 = por %p88, %p89
      %p91 = scmp.ne.s32.totalorder %s83, %s86
      %p92 = scmp.eq.s32.totalorder %s20, 0
      %p93 = por %p91, %p92
      %p94 = scmp.ne.s32.totalorder %s83, %s86
      %p95 = scmp.eq.s32.totalorder %s25, 1
      %p96 = por %p94, %p95
      %p97 = scmp.ne.s32.totalorder %s86, %s87
      %p98 = scmp.eq.s32.totalorder %s25, 0
      %p99 = por %p97, %p98
      %p100 = scmp.ne.s32.totalorder %s86, %s87
      %p101 = scmp.eq.s32.totalorder %s26, 1
      %p102 = por %p100, %p101
      %p104 = scmp.ne.s32.totalorder %s87, %s103
      %p105 = scmp.eq.s32.totalorder %s26, 0
      %p106 = por %p104, %p105
      %s107 = ssub.s32 %s27, %s46
      %s108 = ssub.s32 %s28, %s42
      %s109 = sor.u32 %s107, %s108
      %p110 = scmp.eq.s32.totalorder %s109, 0
      %s112 = sadd.s32 %s111, 1
      %s113 = scalar_select %p110, %s111, %s112
      %p116 = pneg %p110
      %p117 = scmp.eq.s32.totalorder %s20, 1
      %p118 = por %p116, %p117
      %p119 = scmp.ne.s32.totalorder %s111, %s114
      %p120 = scmp.eq.s32.totalorder %s20, 0
      %p121 = por %p119, %p120
      %p122 = scmp.ne.s32.totalorder %s111, %s114
      %p123 = scmp.eq.s32.totalorder %s25, 1
      %p124 = por %p122, %p123
      %p125 = scmp.ne.s32.totalorder %s114, %s115
      %p126 = scmp.eq.s32.totalorder %s25, 0
      %p127 = por %p125, %p126
      %p128 = scmp.ne.s32.totalorder %s114, %s115
      %p129 = scmp.eq.s32.totalorder %s26, 1
      %p130 = por %p128, %p129
      %p132 = scmp.ne.s32.totalorder %s115, %s131
      %p133 = scmp.eq.s32.totalorder %s26, 0
      %p134 = por %p132, %p133
      %s135 = ssub.s32 %s27, %s46
      %s136 = ssub.s32 %s28, %s42
      %s137 = sor.u32 %s135, %s136
      %p138 = scmp.eq.s32.totalorder %s137, 0
      %s140 = sadd.s32 %s139, 1
      %s141 = scalar_select %p138, %s139, %s140
      %p144 = pneg %p138
      %p145 = scmp.eq.s32.totalorder %s20, 1
      %p146 = por %p144, %p145
      %p147 = scmp.ne.s32.totalorder %s139, %s142
      %p148 = scmp.eq.s32.totalorder %s20, 0
      %p149 = por %p147, %p148
      %p150 = scmp.ne.s32.totalorder %s139, %s142
      %p151 = scmp.eq.s32.totalorder %s25, 1
      %p152 = por %p150, %p151
      %p153 = scmp.ne.s32.totalorder %s142, %s143
      %p154 = scmp.eq.s32.totalorder %s25, 0
      %p155 = por %p153, %p154
      %p156 = scmp.ne.s32.totalorder %s142, %s143
      %p157 = scmp.eq.s32.totalorder %s26, 1
      %p158 = por %p156, %p157
      %p160 = scmp.ne.s32.totalorder %s143, %s159
      %p161 = scmp.eq.s32.totalorder %s26, 0
      %p162 = por %p160, %p161
      %s163 = ssub.s32 %s27, %s46
      %s164 = ssub.s32 %s28, %s42
      %s165 = sor.u32 %s163, %s164
      %p166 = scmp.eq.s32.totalorder %s165, 0
      %s168 = sadd.s32 %s167, 1
      %s169 = scalar_select %p166, %s167, %s168
      %p172 = pneg %p166
      %p173 = scmp.eq.s32.totalorder %s20, 1
      %p174 = por %p172, %p173
      %p175 = scmp.ne.s32.totalorder %s167, %s170
      %p176 = scmp.eq.s32.totalorder %s20, 0
      %p177 = por %p175, %p176
      %p178 = scmp.ne.s32.totalorder %s167, %s170
      %p179 = scmp.eq.s32.totalorder %s25, 1
      %p180 = por %p178, %p179
      %p181 = scmp.ne.s32.totalorder %s170, %s171
      %p182 = scmp.eq.s32.totalorder %s25, 0
      %p183 = por %p181, %p182
      %p184 = scmp.ne.s32.totalorder %s170, %s171
      %p185 = scmp.eq.s32.totalorder %s26, 1
      %p186 = por %p184, %p185
      %p188 = scmp.ne.s32.totalorder %s171, %s187
      %p189 = scmp.eq.s32.totalorder %s26, 0
      %p190 = por %p188, %p189
      %p191 = scmp.le.s32.totalorder 1, %s20
      %p192 = scmp.lt.s32.totalorder %s20, 3
      %p193 = pnand %p191, %p192
      %p194 = pneg %p193
      // Predicated region
      $region9: #{tpu_custom_call.1} parent=5 // pred_check
        _
      $region10: #{tpu_custom_call.1} parent=5 // pred_check_branch
        %196 = sbr.rel (%p193) target = $region12
      $region11: #{tpu_custom_call.1} parent=5 // pred_region
        %s197 = ssub.s32 %s20, 1
      $region12: #{tpu_custom_call.1} parent=5 // pred_fallthru
        _
      %p198 = scmp.lt.s32.totalorder %s20, 2
      // Predicated region
      $region13: #{tpu_custom_call.1} parent=5 // pred_check
        %p199 = pneg %p198
      $region14: #{tpu_custom_call.1} parent=5 // pred_check_branch
        %201 = sbr.rel (%p199) target = $region16
      $region15: #{tpu_custom_call.1} parent=5 // pred_region
        // Predicated region
        $region17: #{tpu_custom_call.1} parent=15 // pred_check
          %p202 = pneg %p63
        $region18: #{tpu_custom_call.1} parent=15 // pred_check_branch
          %204 = sbr.rel (%p202) target = $region20
        $region19: #{tpu_custom_call.1} parent=15 // pred_region
          %s205 = sand.u32 %s53, 1
          %s206 = scalar_lea.sflag [#allocation6], %s205
          %s207 = sand.u32 %s53, 1
          %s208 = smul.addr %s207, 8
          %s209 = scalar_lea.vmem [#allocation5], %s208
          %s210 = sadd.s32 %s28, %s29
          %s211 = smul.u32 2, %s210
          %213 = vsyncadd %s206, 0
          %s214 = smul.addr %s27, 2
          %s215 = sadd.s32 %s211, %s214
          %s216 = smul.addr %s215, 4
          %s217 = scalar_lea.hbm %s0, %s216
          %s219 = sshll.u32 %s217, 4
          %s220 = int_to_ptr.hbm [resolvable:$true] %s219
          %s221 = sshll.u32 %s209, 4
          %s222 = int_to_ptr.vmem [resolvable:$true] %s221
          %224 = dma.hbm_to_vmem [thread:$0]  %s220, 128, %s222, %s206
        $region20: #{tpu_custom_call.1} parent=15 // pred_fallthru
          _
        // Predicated region
        $region21: #{tpu_custom_call.1} parent=15 // pred_check
          %p225 = pneg %p93
        $region22: #{tpu_custom_call.1} parent=15 // pred_check_branch
          %227 = sbr.rel (%p225) target = $region24
        $region23: #{tpu_custom_call.1} parent=15 // pred_region
          %s228 = sadd.s32 %s28, %s29
          %s229 = smul.u32 2, %s228
          %p230 = scmp.lt.s32.totalorder %s27, 1
          %s231 = scalar_select %p230, %s27, 1
          %p232 = scmp.lt.s32.totalorder %s229, 1
          %s233 = scalar_select %p232, %s229, 1
          %s234 = smul.addr %s231, 2
          %s235 = sadd.s32 %s233, %s234
          %s236 = scalar_lea.vmem %s1, %s235
          %s237 = sadd.s32 %s28, %s29
          %s238 = smul.u32 2, %s237
        $region24: #{tpu_custom_call.1} parent=15 // pred_fallthru
          _
      $region16: #{tpu_custom_call.1} parent=5 // pred_fallthru
        _
      %p239 = scmp.le.s32.totalorder 1, %s20
      %p240 = scmp.lt.s32.totalorder %s20, 3
      %p241 = pnand %p239, %p240
      %p242 = pneg %p241
      // Predicated region
      $region25: #{tpu_custom_call.1} parent=5 // pred_check
        _
      $region26: #{tpu_custom_call.1} parent=5 // pred_check_branch
        %244 = sbr.rel (%p241) target = $region28
      $region27: #{tpu_custom_call.1} parent=5 // pred_region
        %s245 = ssub.s32 %s20, 1
        %s246 = sand.u32 %s56, 1
        %s247 = scalar_lea.sflag [#allocation6], %s246
        %s248 = sand.u32 %s56, 1
        %s249 = smul.addr %s248, 8
        %s250 = scalar_lea.vmem [#allocation5], %s249
        // Predicated region
        $region29: #{tpu_custom_call.1} parent=27 // pred_check
          %p251 = pneg %p69
        $region30: #{tpu_custom_call.1} parent=27 // pred_check_branch
          %253 = sbr.rel (%p251) target = $region32
        $region31: #{tpu_custom_call.1} parent=27 // pred_region
          %255 = dma.done %s247, 128
        $region32: #{tpu_custom_call.1} parent=27 // pred_fallthru
          _
        %s256 = sand.u32 %s56, 1
        %s257 = scalar_lea.sflag [#allocation6], %s256
        %s258 = sand.u32 %s56, 1
        %s259 = smul.addr %s258, 8
        %s260 = scalar_lea.vmem [#allocation5], %s259
        %p261 = pneg %p69
        %p262 = pneg %p66
        %s263 = sadd.s32 %s31, %s32
        %s264 = smul.u32 2, %s263
        %p265 = scmp.lt.s32.totalorder %s30, 1
        %s266 = scalar_select %p265, %s30, 1
        %p267 = scmp.lt.s32.totalorder %s264, 1
        %s268 = scalar_select %p267, %s264, 1
        %s269 = smul.addr %s266, 2
        %s270 = sadd.s32 %s268, %s269
        %s271 = scalar_lea.vmem %s1, %s270
        %p272 = pneg %p99
        %p273 = pneg %p96
        %p274 = pneg %p127
        %p275 = pneg %p124
        %s276 = sand.u32 %s114, 1
        %s277 = scalar_lea.sflag [#allocation7], %s276
        %s278 = sand.u32 %s114, 1
        %s279 = scalar_lea.vmem [#allocation8], %s278
        %p280 = pneg %p155
        %p281 = pneg %p152
        %s282 = sand.u32 %s25, 1
        %s283 = scalar_lea.sflag [#allocation10], %s282
        %s284 = sand.u32 %s142, 1
        %s285 = smul.addr %s284, 4
        %s286 = scalar_lea.vmem [#allocation9], %s285
        %p287 = pneg %p183
        %p288 = pneg %p180
        %s289 = sand.u32 %s25, 1
        %s290 = scalar_lea.sflag [#allocation10], %s289
        %s291 = sand.u32 %s170, 1
        %s292 = smul.addr %s291, 4
        %s293 = scalar_lea.vmem [#allocation11], %s292
        %s294 = sadd.s32 %s31, %s32
        %s295 = smul.u32 2, %s294
        %s296 = sadd.s32 %s31, %s32
        %s297 = smul.u32 2, %s296
        %p298 = scmp.lt.s32.totalorder %s30, 1
        %s299 = scalar_select %p298, %s30, 1
        %p300 = scmp.lt.s32.totalorder %s297, 1
        %s301 = scalar_select %p300, %s297, 1
        %s302 = smul.addr %s299, 2
        %s303 = sadd.s32 %s301, %s302
        %s304 = scalar_lea.vmem %s1, %s303
        %s305 = sadd.s32 %s31, %s32
        %s306 = smul.u32 2, %s305
        %p307 = scmp.eq.s32.totalorder %s32, 0
        // Predicated region
        $region33: #{tpu_custom_call.1} parent=27 // pred_check
          %p308 = pneg %p307
        $region34: #{tpu_custom_call.1} parent=27 // pred_check_branch
          %310 = sbr.rel (%p308) target = $region36
        $region35: #{tpu_custom_call.1} parent=27 // pred_region
          %vm311 = vcmask 0
          %312 = vst.msk [vmem:[#allocation2] sm:$0x1] %vm311, 0.0
          %vm313 = vcmask 3072
          %314 = vst.msk [vmem:[#allocation3] sm:$0xf] %vm313, 0.0
          %315 = vst.msk [vmem:[#allocation4] sm:$0xf] %vm313, 0.0
        $region36: #{tpu_custom_call.1} parent=27 // pred_fallthru
          _
        %v316 = vld [vmem:[%s250] sm:$0xff]
        %v317 = vld [vmem:[%s304] sm:$0x3]
        %v318 = vunpack.c.0.s8 %v317
        %320 = vst [vmem:[#allocation1] ss:$2 sm:$0xff] %v316
        %v321 = vld.sshfl [vmem:[#allocation1] sm:$0xff pattern:$0x75316420]
        %v322 = vld.sshfl [vmem:[#allocation1 + $0x8] sm:$0xff pattern:$0x75316420]
        %vm325 = vcmask 1043456
        %v326 = vsel %vm325, %v321, -inf
        %v327 = vrot.slane %v326, 4
        %v328 = vmax.f32 %v326, %v327
        %v329 = vrot.slane %v328, 2
        %v330 = vmax.f32 %v328, %v329
        %v331 = vrot.slane %v330, 1
        %v332 = vmax.f32 %v330, %v331
        %v333 = vsel %vm325, %v322, -inf
        %v334 = vrot.slane %v333, 4
        %v335 = vmax.f32 %v333, %v334
        %v336 = vrot.slane %v335, 2
        %v337 = vmax.f32 %v335, %v336
        %v338 = vrot.slane %v337, 1
        %v339 = vmax.f32 %v337, %v338
        %v342 = vrot.slane %v339, 4
        %v343 = vsel %vm325, %v332, %v342
        %v345 = vsub.f32 %v316, %v343
        %v346 = vmul.f32 %v345, 1.442695
        %v347 = vpow.pop %v346
        %349 = vst [vmem:[#allocation1] ss:$2 sm:$0xff] %v347
        %v350 = vld.sshfl [vmem:[#allocation1] sm:$0xff pattern:$0x75316420]
        %v351 = vld.sshfl [vmem:[#allocation1 + $0x8] sm:$0xff pattern:$0x75316420]
        %v354 = vsel %vm325, %v350, 0.0
        %v355 = vrot.slane %v354, 4
        %v356 = vadd.f32 %v354, %v355
        %v357 = vrot.slane %v356, 2
        %v358 = vadd.f32 %v356, %v357
        %v359 = vrot.slane %v358, 1
        %v360 = vadd.f32 %v358, %v359
        %v361 = vsel %vm325, %v351, 0.0
        %v362 = vrot.slane %v361, 4
        %v363 = vadd.f32 %v361, %v362
        %v364 = vrot.slane %v363, 2
        %v365 = vadd.f32 %v363, %v364
        %v366 = vrot.slane %v365, 1
        %v367 = vadd.f32 %v365, %v366
        %v368 = vrcp.pop %v360
        %v369 = vrcp.pop %v367
        %v370 = vmul.f32 %v360, %v368
        %v371 = vmul.f32 %v367, %v369
        %v372 = vsub.f32 2.0, %v370
        %v373 = vsub.f32 2.0, %v371
        %v374 = vmul.f32 %v368, %v372
        %v375 = vmul.f32 %v369, %v373
        %v378 = vrot.slane %v375, 4
        %v379 = vsel %vm325, %v374, %v378
        %v381 = vmul.f32 %v347, %v379
        %v382 = vlog2.pop %v360
        %v383 = vmul.f32 %v382, 0.6931472
        %v384 = vlog2.pop %v367
        %v385 = vmul.f32 %v384, 0.6931472
        %v386 = vlaneseq
        %v387 = vshrl.u32 %v386, 7
        %v388 = vperm.slane %v318, 0
        %v389 = vperm.slane %v318, 4
        %v390 = vperm.slane %v388, 0
        %v391 = vperm.slane %v389, 0
        %vm392 = vcmp.eq.s32.totalorder %v387, %v390
        %vm393 = vcmp.eq.s32.totalorder %v387, %v391
        %v394 = vsel %vm392, 1, 0
        %v395 = vsel %vm393, 1, 0
        %v396 = vcvt.s32.f32 %v394
        %v397 = vcvt.s32.f32 %v395
        %399 = vst [vmem:[#allocation1] ss:$2 sm:$0xff] %v345
        %v400 = vld.sshfl [vmem:[#allocation1] sm:$0xff pattern:$0x75316420]
        %v401 = vld.sshfl [vmem:[#allocation1 + $0x8] sm:$0xff pattern:$0x75316420]
        %v404 = vmul.f32 %v396, %v400
        %v405 = vmul.f32 %v397, %v401
        %v406 = vsel %vm325, %v404, 0.0
        %v407 = vrot.slane %v406, 4
        %v408 = vadd.f32 %v406, %v407
        %v409 = vrot.slane %v408, 2
        %v410 = vadd.f32 %v408, %v409
        %v411 = vrot.slane %v410, 1
        %v412 = vadd.f32 %v410, %v411
        %v413 = vsel %vm325, %v405, 0.0
        %v414 = vrot.slane %v413, 4
        %v415 = vadd.f32 %v413, %v414
        %v416 = vrot.slane %v415, 2
        %v417 = vadd.f32 %v415, %v416
        %v418 = vrot.slane %v417, 1
        %v419 = vadd.f32 %v417, %v418
        %v420 = vsub.f32 %v383, %v412
        %v421 = vsub.f32 %v385, %v419
        %v422 = vld [vmem:[#allocation2] sm:$0x1]
        %v423 = vadd.f32 %v420, %v421
        %424 = vadd.xlane.f32.xlu0 %v423
        %v425 = vpop.xlane.xlu0 %424
        %v426 = vadd.f32 %v422, %v425
        %vm427 = vcmask 0
        %428 = vst.msk [vmem:[#allocation2] sm:$0x1] %vm427, %v426
        %v429 = vld [vmem:[#allocation3] sm:$0xf]
        %v432 = vrot.slane %v397, 4
        %v433 = vsel %vm325, %v396, %v432
        %v435 = vmul.f32 %v381, %v433
        %437 = vst [vmem:[#allocation1] ss:$2 sm:$0xff] %v435
        %v438 = vld.sshfl [vmem:[#allocation1] sm:$0xff pattern:$0x75316420]
        %v439 = vld.sshfl [vmem:[#allocation1 + $0x8] sm:$0xff pattern:$0x75316420]
        %v442 = vsel %vm325, %v438, 0.0
        %v443 = vsel %vm325, %v439, 0.0
        %v444 = vadd.f32 %v442, %v443
        %445 = vadd.xlane.f32.xlu0 %v444
        %v446 = vpop.xlane.xlu0 %445
        %v447 = vadd.f32 %v429, %v446
        %vm448 = vcmask 3072
        %449 = vst.msk [vmem:[#allocation3] sm:$0xf] %vm448, %v447
        %v450 = vld [vmem:[#allocation4] sm:$0xf]
        %452 = vst [vmem:[#allocation1] ss:$2 sm:$0xff] %v381
        %v453 = vld.sshfl [vmem:[#allocation1] sm:$0xff pattern:$0x75316420]
        %v454 = vld.sshfl [vmem:[#allocation1 + $0x8] sm:$0xff pattern:$0x75316420]
        %v457 = vsel %vm325, %v453, 0.0
        %v458 = vsel %vm325, %v454, 0.0
        %v459 = vadd.f32 %v457, %v458
        %460 = vadd.xlane.f32.xlu0 %v459
        %v461 = vpop.xlane.xlu0 %460
        %v462 = vsel %vm325, %v396, 0.0
        %v463 = vsel %vm325, %v397, 0.0
        %v464 = vadd.f32 %v462, %v463
        %465 = vadd.xlane.f32.xlu0 %v464
        %v466 = vpop.xlane.xlu0 %465
        %v467 = vadd.f32 %v461, %v466
        %v468 = vadd.f32 %v450, %v467
        %469 = vst.msk [vmem:[#allocation4] sm:$0xf] %vm448, %v468
        // Predicated region
        $region37: #{tpu_custom_call.1} parent=27 // pred_check
          %p470 = pneg %p307
        $region38: #{tpu_custom_call.1} parent=27 // pred_check_branch
          %472 = sbr.rel (%p470) target = $region40
        $region39: #{tpu_custom_call.1} parent=27 // pred_region
          %v473 = vld [vmem:[#allocation2] sm:$0x1]
          %475 = vset.pattern.permute.xlu0 0
          %476 = vperm.xlu0 %475, %v473
          %v477 = vpop.permute.xlu0 %476
          %v479 = vperm.slane %v477, 0
          %480 = vst [vmem:[%s279] sm:$0x1] %v479
          %v481 = vld [vmem:[#allocation3] sm:$0xf]
          %483 = vset.pattern.permute.xlu0 0
          %484 = vperm.xlu0 %483, %v481
          %v485 = vpop.permute.xlu0 %484
          %487 = vst [vmem:[%s286] sm:$0xf] %v485
          %v488 = vld [vmem:[#allocation4] sm:$0xf]
          %490 = vset.pattern.permute.xlu0 0
          %491 = vperm.xlu0 %490, %v488
          %v492 = vpop.permute.xlu0 %491
          %494 = vst [vmem:[%s293] sm:$0xf] %v492
        $region40: #{tpu_custom_call.1} parent=27 // pred_fallthru
          _
        %s495 = sand.u32 %s114, 1
        %s496 = scalar_lea.sflag [#allocation7], %s495
        %s497 = sand.u32 %s114, 1
        %s498 = scalar_lea.vmem [#allocation8], %s497
        %s499 = sand.u32 %s25, 1
        %s500 = scalar_lea.sflag [#allocation10], %s499
        %s501 = sand.u32 %s142, 1
        %s502 = smul.addr %s501, 4
        %s503 = scalar_lea.vmem [#allocation9], %s502
        %s504 = sand.u32 %s25, 1
        %s505 = scalar_lea.sflag [#allocation10], %s504
        %s506 = sand.u32 %s170, 1
        %s507 = smul.addr %s506, 4
        %s508 = scalar_lea.vmem [#allocation11], %s507
        // Predicated region
        $region41: #{tpu_custom_call.1} parent=27 // pred_check
          %p509 = pneg %p124
        $region42: #{tpu_custom_call.1} parent=27 // pred_check_branch
          %511 = sbr.rel (%p509) target = $region44
        $region43: #{tpu_custom_call.1} parent=27 // pred_region
          %513 = vsyncadd %s496, 0
          %s514 = sadd.s32 %s31, %s30
          %s515 = scalar_lea.hbm %s2, %s514
          %s517 = sshll.u32 %s498, 4
          %s518 = int_to_ptr.vmem [resolvable:$true] %s517
          %s519 = sshll.u32 %s515, 4
          %s520 = int_to_ptr.hbm [resolvable:$true] %s519
          %522 = dma.vmem_to_hbm [thread:$0]  %s518, 16, %s520, %s496
        $region44: #{tpu_custom_call.1} parent=27 // pred_fallthru
          _
        // Predicated region
        $region45: #{tpu_custom_call.1} parent=27 // pred_check
          %p523 = pneg %p152
        $region46: #{tpu_custom_call.1} parent=27 // pred_check_branch
          %525 = sbr.rel (%p523) target = $region48
        $region47: #{tpu_custom_call.1} parent=27 // pred_region
          %527 = vsyncadd %s500, 0
          %s528 = sadd.s32 %s31, %s30
          %s529 = smul.addr %s528, 4
          %s530 = scalar_lea.hbm %s3, %s529
          %s532 = sshll.u32 %s503, 4
          %s533 = int_to_ptr.vmem [resolvable:$true] %s532
          %s534 = sshll.u32 %s530, 4
          %s535 = int_to_ptr.hbm [resolvable:$true] %s534
          %537 = dma.vmem_to_hbm [thread:$0]  %s533, 64, %s535, %s500
        $region48: #{tpu_custom_call.1} parent=27 // pred_fallthru
          _
        // Predicated region
        $region49: #{tpu_custom_call.1} parent=27 // pred_check
          %p538 = pneg %p180
        $region50: #{tpu_custom_call.1} parent=27 // pred_check_branch
          %540 = sbr.rel (%p538) target = $region52
        $region51: #{tpu_custom_call.1} parent=27 // pred_region
          %542 = vsyncadd %s505, 0
          %s543 = sadd.s32 %s31, %s30
          %s544 = smul.addr %s543, 4
          %s545 = scalar_lea.hbm %s4, %s544
          %s547 = sshll.u32 %s508, 4
          %s548 = int_to_ptr.vmem [resolvable:$true] %s547
          %s549 = sshll.u32 %s545, 4
          %s550 = int_to_ptr.hbm [resolvable:$true] %s549
          %552 = dma.vmem_to_hbm [thread:$0]  %s548, 64, %s550, %s505
        $region52: #{tpu_custom_call.1} parent=27 // pred_fallthru
          _
      $region28: #{tpu_custom_call.1} parent=5 // pred_fallthru
        _
      %p553 = scmp.le.s32.totalorder 2, %s20
      // Predicated region
      $region53: #{tpu_custom_call.1} parent=5 // pred_check
        %p554 = pneg %p553
      $region54: #{tpu_custom_call.1} parent=5 // pred_check_branch
        %556 = sbr.rel (%p554) target = $region56
      $region55: #{tpu_custom_call.1} parent=5 // pred_region
        %s557 = ssub.s32 %s20, 2
        // Predicated region
        $region57: #{tpu_custom_call.1} parent=55 // pred_check
          %p558 = pneg %p130
        $region58: #{tpu_custom_call.1} parent=55 // pred_check_branch
          %560 = sbr.rel (%p558) target = $region60
        $region59: #{tpu_custom_call.1} parent=55 // pred_region
          %s561 = sand.u32 %s115, 1
          %s562 = scalar_lea.sflag [#allocation7], %s561
          %s563 = sand.u32 %s115, 1
          %s564 = scalar_lea.vmem [#allocation8], %s563
          %566 = dma.done %s562, 16
        $region60: #{tpu_custom_call.1} parent=55 // pred_fallthru
          _
        // Predicated region
        $region61: #{tpu_custom_call.1} parent=55 // pred_check
          %p567 = pneg %p158
        $region62: #{tpu_custom_call.1} parent=55 // pred_check_branch
          %569 = sbr.rel (%p567) target = $region64
        $region63: #{tpu_custom_call.1} parent=55 // pred_region
          %s570 = sand.u32 %s26, 1
          %s571 = scalar_lea.sflag [#allocation10], %s570
          %s572 = sand.u32 %s143, 1
          %s573 = smul.addr %s572, 4
          %s574 = scalar_lea.vmem [#allocation9], %s573
          %576 = dma.done %s571, 64
        $region64: #{tpu_custom_call.1} parent=55 // pred_fallthru
          _
        // Predicated region
        $region65: #{tpu_custom_call.1} parent=55 // pred_check
          %p577 = pneg %p186
        $region66: #{tpu_custom_call.1} parent=55 // pred_check_branch
          %579 = sbr.rel (%p577) target = $region68
        $region67: #{tpu_custom_call.1} parent=55 // pred_region
          %s580 = sand.u32 %s26, 1
          %s581 = scalar_lea.sflag [#allocation10], %s580
          %s582 = sand.u32 %s171, 1
          %s583 = smul.addr %s582, 4
          %s584 = scalar_lea.vmem [#allocation11], %s583
          %586 = dma.done %s581, 64
        $region68: #{tpu_custom_call.1} parent=55 // pred_fallthru
          _
      $region56: #{tpu_custom_call.1} parent=5 // pred_fallthru
        _
    $region6: #{tpu_custom_call.1} parent=1 // loop_footer
      %s24 = sadd.s32 1, %s20
    $region7: #{tpu_custom_call.1} parent=1 // loop_footer_branch
      %19 = sbr.rel target = $region3
    $region8: #{tpu_custom_call.1} parent=1 // loop_exit
      _
    %587 = vsyncpa [#allocation6], 1
    %s588 = scalar_lea.sflag [#allocation6], 1
    %589 = vsyncpa %s588, 1
    %590 = vsyncpa [#allocation7], 1
    %s591 = scalar_lea.sflag [#allocation7], 1
    %592 = vsyncpa %s591, 1
    %593 = vsyncpa [#allocation10], 1
    %s594 = scalar_lea.sflag [#allocation10], 1
    %595 = vsyncpa %s594, 1

</llo_original>
